<compile_context>
chip_gen: v6e
topology: v6e:2x2x1
jax: 0.10.0
libtpu: 0.0.40
codegen_flags: <defaults>
</compile_context>

<pallas_src>
import functools

import numpy as np
import jax
import jax.numpy as jnp
from jax import lax
from jax.experimental import pallas as pl
from jax.experimental.pallas import tpu as pltpu


_NEG_BIG = -1e30   # finite "-inf": avoids inf-inf -> NaN on fully masked chunks


def bayes_chunk_kernel(c1_ref, c2_ref, x_ref, data_ref, m_ref, l_ref, acc_ref,
                       *, steps, tn, n_valid, needs_mask):
    """One grid step processes a (TN, D) chunk of the (padded) data batch.

    grid = (num_shards, steps); axis 0 "parallel", axis 1 "arbitrary".

    c1_ref:  (B, 1)   f32  sa/var                   (resident)
    c2_ref:  (B, 1)   f32  0.5*sa^2/var             (resident)
    x_ref:   (B, D)   data dtype, flattened inputs  (resident)
    data_ref:(TN, D)  data dtype, chunk of candidate clean data points
    m_ref:   (B, 1)   f32  per-shard running max    (output, resident over axis 1)
    l_ref:   (B, 1)   f32  per-shard normalizer     (output, resident over axis 1)
    acc_ref: (B, D)   f32  per-shard sum_n p_n*d_n  (output, resident over axis 1)
    """
    j = pl.program_id(1)

    @pl.when(j == 0)
    def _init():
        m_ref[...] = jnp.full_like(m_ref, _NEG_BIG)
        l_ref[...] = jnp.zeros_like(l_ref)
        acc_ref[...] = jnp.zeros_like(acc_ref)

    c1 = c1_ref[...]                       # (B, 1) f32
    c2 = c2_ref[...]                       # (B, 1) f32
    x = x_ref[...]                         # (B, D)  data dtype (pre-cast in wrapper)
    data = data_ref[...]                   # (TN, D) data dtype

    # ||d_n||^2 from the streamed tile (saves the wrapper's second full HBM
    # pass over data).  Square on the VPU, reduce over D with an idle-MXU
    # ones-row matmul that yields a lane-major (1, TN) row directly.
    sq = data * data                                                   # (TN, D)
    ones_row = jnp.ones((8, data.shape[1]), dtype=data.dtype)
    dsq = lax.dot_general(ones_row, sq, (((1,), (1,)), ((), ())),
                          preferred_element_type=jnp.float32)[0:1, :]  # (1, TN)

    # Cross term on the MXU: x @ data.T.  Transposed-RHS dot_general with the
    # same dimension numbers as the official Pallas flash-attention kernel,
    # so no (TN, D) transpose is materialized.
    xdot = lax.dot_general(x, data, (((1,), (1,)), ((), ())),
                           preferred_element_type=jnp.float32)         # (B, TN)
    logits = c1 * xdot - c2 * dsq                                      # (B, TN)

    if needs_mask:
        # N was padded up to a tile multiple; padded columns -> huge negative
        # logit -> p == 0 (padded data rows are zeros, so no inf/NaN anywhere).
        base = (pl.program_id(0) * steps + j) * tn
        col = lax.broadcasted_iota(jnp.int32, logits.shape, 1)
        logits = jnp.where(base + col < n_valid, logits, _NEG_BIG)

    # Online softmax over the data-batch axis (grid axis 1).
    m_prev = m_ref[...]
    m_new = jnp.maximum(m_prev, jnp.max(logits, axis=1, keepdims=True))
    corr = jnp.exp(m_prev - m_new)                                     # (B, 1)
    p = jnp.exp(logits - m_new)                                        # (B, TN)
    l_ref[...] = corr * l_ref[...] + jnp.sum(p, axis=1, keepdims=True)
    acc_ref[...] = corr * acc_ref[...] + jnp.dot(
        p.astype(data.dtype), data, preferred_element_type=jnp.float32)
    m_ref[...] = m_new


def _round_up(a, m):
    return -(-a // m) * m


def _vmem_capacity_bytes():
    try:
        info = pltpu.get_tpu_info()
        for name in ("vmem_capacity_bytes", "vmem_bytes", "vmem_size_bytes"):
            v = getattr(info, name, None)
            if isinstance(v, (int, np.integer)) and v > 0:
                return int(v)
    except Exception:
        pass
    return 64 * 1024 * 1024          # conservative (v7x-sized) fallback


def _default_num_shards():
    """2 only when the device exposes >1 TensorCore; 1 on v5e/v6e."""
    # TODO(synk): on v7x verify in the trace that the "parallel" shard axis
    # actually lands on both TensorCores (else switch to pltpu.CORE_PARALLEL).
    try:
        info = pltpu.get_tpu_info()
        for name in ("num_cores", "core_count", "tensorcore_count",
                     "num_tensorcores"):
            v = getattr(info, name, None)
            if isinstance(v, (int, np.integer)) and v > 0:
                return min(int(v), 2)
    except Exception:
        pass
    try:
        v = getattr(jax.devices()[0], "num_cores", None)
        if isinstance(v, (int, np.integer)) and v > 0:
            return min(int(v), 2)
    except Exception:
        pass
    return 1


def _pick_tn(n_per_shard, d, data_itemsize, budget_bytes):
    """Largest lane-aligned data chunk whose live bytes (2 pipeline buffers of
    the (tn, D) block + one same-dtype temp for the in-kernel square) fit the
    per-generation VMEM budget."""
    bytes_per_row = d * data_itemsize * 3
    cap = max(8, int(budget_bytes // max(bytes_per_row, 1)))
    if n_per_shard <= cap:
        return _round_up(n_per_shard, 8)
    tn = min(cap, 2048)                    # >~2K rows/chunk gains nothing
    tn = (tn // 128) * 128 if tn >= 128 else (tn // 8) * 8
    return max(tn, 8)


def bayes_predict_eps(inputs, alphas, data_batch, *, tn=None, num_shards=None,
                      data_dtype=jnp.bfloat16):
    """inputs: (B,C,H,W), alphas: (B,), data_batch: (N,C,H,W) -> eps (B,C,H,W).

    data_dtype=jnp.bfloat16 (default) halves HBM traffic on the dominant data
    stream; data_dtype=jnp.float32 matches the PyTorch reference to ~1e-3.
    """
    orig_shape = inputs.shape
    B = inputs.shape[0]
    N = data_batch.shape[0]
    D = int(np.prod(inputs.shape[1:]))

    # Generation-aware budgets (v7x: 64 MiB VMEM; v5e/v6e: 128 MiB).
    vmem_cap = _vmem_capacity_bytes()
    vmem_limit = min(vmem_cap * 7 // 8, 100 * 1024 * 1024)
    data_budget = min(vmem_cap // 3, 40 * 1024 * 1024)

    if num_shards is None:
        num_shards = _default_num_shards()
    num_shards = max(1, min(num_shards, N))

    # Flatten features onto the lane axis; pad batch to a full sublane group.
    # NOTE: padded rows use alpha=0.5 on purpose -- alpha=1 would give var=0
    # and inf/NaN c1/c2 (padded rows are sliced off at the end either way).
    B_pad = _round_up(B, 8)
    x_f32 = jnp.zeros((B_pad, D), jnp.float32).at[:B].set(
        inputs.reshape(B, D).astype(jnp.float32))
    alpha = jnp.full((B_pad, 1), 0.5, jnp.float32).at[:B].set(
        alphas.reshape(B, 1).astype(jnp.float32))

    # Per-sample constants, precomputed once (no per-step sqrt/log/div).
    sa = jnp.sqrt(alpha)                   # (B_pad, 1)
    var = 1.0 - alpha                      # (B_pad, 1)
    c1 = sa / var                          # (B_pad, 1)
    c2 = 0.5 * sa * sa / var               # (B_pad, 1)

    data_itemsize = jnp.dtype(data_dtype).itemsize
    n_per_shard = -(-N // num_shards)
    if tn is None:
        tn = _pick_tn(n_per_shard, D, data_itemsize, data_budget)
    tn = _round_up(min(int(tn), _round_up(n_per_shard, 8)), 8)
    steps = -(-n_per_shard // tn)
    N_pad = num_shards * steps * tn

    # Single HBM pass over data per call, streamed at data_dtype.  Awkward N
    # is zero-padded (and masked in-kernel) so every block stays lane-dense.
    data = data_batch.reshape(N, D).astype(data_dtype)
    if N_pad != N:
        data = jnp.zeros((N_pad, D), data_dtype).at[:N].set(data)
    x_lp = x_f32.astype(data_dtype)

    kernel = functools.partial(bayes_chunk_kernel, steps=steps, tn=tn,
                               n_valid=N, needs_mask=(N_pad != N))

    # TODO(synk): for large B (>=64) add a B tile to the grid; fp8 streaming on
    # v7x and pl.Buffered(3) on the data spec are further (trace-verified) options.
    m_flat, l_flat, acc_flat = pl.pallas_call(
        kernel,
        out_shape=(
            jax.ShapeDtypeStruct((num_shards * B_pad, 1), jnp.float32),
            jax.ShapeDtypeStruct((num_shards * B_pad, 1), jnp.float32),
            jax.ShapeDtypeStruct((num_shards * B_pad, D), jnp.float32),
        ),
        grid_spec=pltpu.PrefetchScalarGridSpec(
            num_scalar_prefetch=0,
            grid=(num_shards, steps),
            in_specs=[
                pl.BlockSpec((B_pad, 1), lambda s, j: (0, 0)),           # c1
                pl.BlockSpec((B_pad, 1), lambda s, j: (0, 0)),           # c2
                pl.BlockSpec((B_pad, D), lambda s, j: (0, 0)),           # x
                pl.BlockSpec((tn, D), lambda s, j: (s * steps + j, 0)),  # data
            ],
            out_specs=(
                pl.BlockSpec((B_pad, 1), lambda s, j: (s, 0)),           # m
                pl.BlockSpec((B_pad, 1), lambda s, j: (s, 0)),           # l
                pl.BlockSpec((B_pad, D), lambda s, j: (s, 0)),           # acc
            ),
        ),
        compiler_params=pltpu.CompilerParams(
            dimension_semantics=("parallel", "arbitrary"),
            vmem_limit_bytes=int(vmem_limit)),
    )(c1, c2, x_lp, data)

    # Tiny JAX epilogue: exact cross-shard log-sum-exp combine, then eps.
    m = m_flat.reshape(num_shards, B_pad, 1)
    l = l_flat.reshape(num_shards, B_pad, 1)
    acc = acc_flat.reshape(num_shards, B_pad, D)
    m_tot = jnp.max(m, axis=0)                       # (B_pad, 1)
    w = jnp.exp(m - m_tot)                           # (num_shards, B_pad, 1)
    l_tot = jnp.sum(l * w, axis=0)                   # (B_pad, 1)
    x0 = jnp.sum(acc * w, axis=0) / l_tot            # (B_pad, D)
    eps = (x_f32 - sa * x0) / jnp.sqrt(var)          # (B_pad, D)
    return eps[:B].reshape(orig_shape)


def bayes_ref(inputs, alphas, data_batch):
    """Pure-JAX reference mirroring the PyTorch module line by line."""
    a = alphas
    while a.ndim < inputs.ndim:
        a = a[..., None]
    means = jnp.sqrt(a)[:, None] * data_batch[None]
    var = 1.0 - a
    while var.ndim < means.ndim:
        var = var[..., None]
    logits = -(0.5 * jnp.log(var) + 0.5 / var * (inputs[:, None] - means) ** 2)
    logits = logits.reshape(logits.shape[0], logits.shape[1], -1).sum(-1)
    logits = logits - jnp.max(logits, axis=1, keepdims=True)
    probs = jnp.exp(logits)
    probs = probs / jnp.sum(probs, axis=1, keepdims=True)
    while probs.ndim < data_batch.ndim + 1:
        probs = probs[..., None]
    x0 = jnp.sum(data_batch[None] * probs, axis=1)
    return (inputs - jnp.sqrt(a) * x0) / jnp.sqrt(1.0 - a)


if __name__ == "__main__":
    key = jax.random.PRNGKey(0)
    k_data, k_alpha, k_idx, k_noise = jax.random.split(key, 4)

    # Small shapes consistent with the module's forward.
    B, N, C, H, W = 2, 16, 4, 16, 16

    # Deterministic "data batch" (the module's only parameter-like state).
    data_batch = jax.random.normal(k_data, (N, C, H, W), jnp.float32)
    alphas = jax.random.uniform(k_alpha, (B,), jnp.float32, 0.3, 0.9)

    # Inputs as noised data points (diffusion forward), the predictor's regime.
    idx = jax.random.randint(k_idx, (B,), 0, N)
    noise = jax.random.normal(k_noise, (B, C, H, W), jnp.float32)
    a4 = alphas[:, None, None, None]
    inputs = jnp.sqrt(a4) * data_batch[idx] + jnp.sqrt(1.0 - a4) * noise

    ref = bayes_ref(inputs, alphas, data_batch)

    # Default (bf16-streamed) path.
    eps = jax.block_until_ready(bayes_predict_eps(inputs, alphas, data_batch))
    assert eps.shape == inputs.shape and eps.dtype == jnp.float32
    np.testing.assert_allclose(np.asarray(eps), np.asarray(ref),
                               rtol=5e-2, atol=5e-2)

    # f32-streamed path matches the PyTorch reference tightly.
    eps32 = jax.block_until_ready(
        bayes_predict_eps(inputs, alphas, data_batch, data_dtype=jnp.float32))
    np.testing.assert_allclose(np.asarray(eps32), np.asarray(ref),
                               rtol=2e-3, atol=2e-3)

    print("KERNEL_OK")
</pallas_src>

<mosaic_0001>
module attributes {stable_mosaic.version = 11 : i64} {
  func.func @bayes_chunk_kernel(%arg0: i32, %arg1: i32, %arg2: memref<8x1xf32, #tpu.memory_space<vmem>>, %arg3: memref<8x1xf32, #tpu.memory_space<vmem>>, %arg4: memref<8x1024xbf16, #tpu.memory_space<vmem>>, %arg5: memref<16x1024xbf16, #tpu.memory_space<vmem>>, %arg6: memref<8x1xf32, #tpu.memory_space<vmem>>, %arg7: memref<8x1xf32, #tpu.memory_space<vmem>>, %arg8: memref<8x1024xf32, #tpu.memory_space<vmem>>) attributes {dimension_semantics = [#tpu.dimension_semantics<parallel>, #tpu.dimension_semantics<arbitrary>], iteration_bounds = array<i64: 1, 1>, scalar_prefetch = 0 : i64, scratch_operands = 0 : i64, tpu.core_type = #tpu.core_type<tc>, window_params = [{pipeline_mode = #tpu.pipeline_mode<synchronous>, transform_indices = @transform_0, window_bounds = array<i64: 8, 1>}, {pipeline_mode = #tpu.pipeline_mode<synchronous>, transform_indices = @transform_1, window_bounds = array<i64: 8, 1>}, {pipeline_mode = #tpu.pipeline_mode<synchronous>, transform_indices = @transform_2, window_bounds = array<i64: 8, 1024>}, {transform_indices = @transform_3, window_bounds = array<i64: 16, 1024>}, {transform_indices = @transform_4, window_bounds = array<i64: 8, 1>}, {transform_indices = @transform_5, window_bounds = array<i64: 8, 1>}, {transform_indices = @transform_6, window_bounds = array<i64: 8, 1024>}]} {
    %c0_i32 = arith.constant 0 : i32
    %0 = arith.cmpi eq, %arg1, %c0_i32 : i32
    %1 = arith.extui %0 : i1 to i32
    %c0_i32_0 = arith.constant 0 : i32
    %2 = arith.cmpi ne, %1, %c0_i32_0 : i32
    scf.if %2 {
      %cst_25 = arith.constant -1.000000e+30 : f32
      %41 = vector.broadcast %cst_25 : f32 to vector<8x1xf32>
      %c0_26 = arith.constant 0 : index
      %c0_27 = arith.constant 0 : index
      %42 = vector.load %arg6[%c0_26, %c0_27] : memref<8x1xf32, #tpu.memory_space<vmem>>, vector<8x1xf32>
      tpu.vector_store %arg6[%c0_26, %c0_27], %41 {strides = array<i32>} : memref<8x1xf32, #tpu.memory_space<vmem>>, vector<8x1xf32>,
      %cst_28 = arith.constant 0.000000e+00 : f32
      %43 = vector.broadcast %cst_28 : f32 to vector<8x1xf32>
      %c0_29 = arith.constant 0 : index
      %c0_30 = arith.constant 0 : index
      %44 = vector.load %arg7[%c0_29, %c0_30] : memref<8x1xf32, #tpu.memory_space<vmem>>, vector<8x1xf32>
      tpu.vector_store %arg7[%c0_29, %c0_30], %43 {strides = array<i32>} : memref<8x1xf32, #tpu.memory_space<vmem>>, vector<8x1xf32>,
      %cst_31 = arith.constant 0.000000e+00 : f32
      %45 = vector.broadcast %cst_31 : f32 to vector<8x1024xf32>
      %c0_32 = arith.constant 0 : index
      %c0_33 = arith.constant 0 : index
      %46 = vector.load %arg8[%c0_32, %c0_33] : memref<8x1024xf32, #tpu.memory_space<vmem>>, vector<8x1024xf32>
      tpu.vector_store %arg8[%c0_32, %c0_33], %45 {strides = array<i32>} : memref<8x1024xf32, #tpu.memory_space<vmem>>, vector<8x1024xf32>,
    } else {
    }
    %c0 = arith.constant 0 : index
    %c0_1 = arith.constant 0 : index
    %3 = vector.load %arg2[%c0, %c0_1] : memref<8x1xf32, #tpu.memory_space<vmem>>, vector<8x1xf32>
    %c0_2 = arith.constant 0 : index
    %c0_3 = arith.constant 0 : index
    %4 = vector.load %arg3[%c0_2, %c0_3] : memref<8x1xf32, #tpu.memory_space<vmem>>, vector<8x1xf32>
    %c0_4 = arith.constant 0 : index
    %c0_5 = arith.constant 0 : index
    %5 = vector.load %arg4[%c0_4, %c0_5] : memref<8x1024xbf16, #tpu.memory_space<vmem>>, vector<8x1024xbf16>
    %c0_6 = arith.constant 0 : index
    %c0_7 = arith.constant 0 : index
    %6 = vector.load %arg5[%c0_6, %c0_7] : memref<16x1024xbf16, #tpu.memory_space<vmem>>, vector<16x1024xbf16>
    %7 = arith.mulf %6, %6 : vector<16x1024xbf16>
    %cst = arith.constant 1.000000e+00 : bf16
    %8 = vector.broadcast %cst : bf16 to vector<8x1024xbf16>
    %cst_8 = arith.constant dense<0.000000e+00> : vector<8x16xf32>
    %9 = tpu.matmul %8, %7, %cst_8 {dimension_numbers = #tpu.dot_dimension_numbers<[1], [1], [0], [0], [0, 0, 1, 0], [], []>} : vector<8x1024xbf16>, vector<16x1024xbf16>, vector<8x16xf32> -> vector<8x16xf32>
    %10 = vector.extract_strided_slice %9 {offsets = [0, 0], sizes = [1, 16], strides = [1, 1]} : vector<8x16xf32> to vector<1x16xf32>
    %cst_9 = arith.constant dense<0.000000e+00> : vector<8x16xf32>
    %11 = tpu.matmul %5, %6, %cst_9 {dimension_numbers = #tpu.dot_dimension_numbers<[1], [1], [0], [0], [0, 0, 1, 0], [], []>} : vector<8x1024xbf16>, vector<16x1024xbf16>, vector<8x16xf32> -> vector<8x16xf32>
    %12 = vector.broadcast %3 : vector<8x1xf32> to vector<8x16xf32>
    %13 = arith.mulf %12, %11 : vector<8x16xf32>
    %14 = vector.broadcast %4 : vector<8x1xf32> to vector<8x16xf32>
    %15 = vector.broadcast %10 : vector<1x16xf32> to vector<8x16xf32>
    %16 = arith.mulf %14, %15 : vector<8x16xf32>
    %17 = arith.subf %13, %16 : vector<8x16xf32>
    %c0_10 = arith.constant 0 : index
    %c0_11 = arith.constant 0 : index
    %18 = vector.load %arg6[%c0_10, %c0_11] : memref<8x1xf32, #tpu.memory_space<vmem>>, vector<8x1xf32>
    %cst_12 = arith.constant dense<0xFF800000> : vector<8xf32>
    %19 = vector.multi_reduction <maximumf>, %17, %cst_12 [1] : vector<8x16xf32> to vector<8xf32>
    %20 = vector.shape_cast %19 : vector<8xf32> to vector<8x1xf32>
    %21 = arith.maximumf %18, %20 : vector<8x1xf32>
    %22 = arith.subf %18, %21 : vector<8x1xf32>
    %23 = math.exp %22 : vector<8x1xf32>
    %24 = vector.broadcast %21 : vector<8x1xf32> to vector<8x16xf32>
    %25 = arith.subf %17, %24 : vector<8x16xf32>
    %26 = math.exp %25 : vector<8x16xf32>
    %c0_13 = arith.constant 0 : index
    %c0_14 = arith.constant 0 : index
    %27 = vector.load %arg7[%c0_13, %c0_14] : memref<8x1xf32, #tpu.memory_space<vmem>>, vector<8x1xf32>
    %28 = arith.mulf %23, %27 : vector<8x1xf32>
    %cst_15 = arith.constant dense<0.000000e+00> : vector<8xf32>
    %29 = vector.multi_reduction <add>, %26, %cst_15 [1] : vector<8x16xf32> to vector<8xf32>
    %30 = vector.shape_cast %29 : vector<8xf32> to vector<8x1xf32>
    %31 = arith.addf %28, %30 : vector<8x1xf32>
    %c0_16 = arith.constant 0 : index
    %c0_17 = arith.constant 0 : index
    %32 = vector.load %arg7[%c0_16, %c0_17] : memref<8x1xf32, #tpu.memory_space<vmem>>, vector<8x1xf32>
    tpu.vector_store %arg7[%c0_16, %c0_17], %31 {strides = array<i32>} : memref<8x1xf32, #tpu.memory_space<vmem>>, vector<8x1xf32>,
    %c0_18 = arith.constant 0 : index
    %c0_19 = arith.constant 0 : index
    %33 = vector.load %arg8[%c0_18, %c0_19] : memref<8x1024xf32, #tpu.memory_space<vmem>>, vector<8x1024xf32>
    %34 = vector.broadcast %23 : vector<8x1xf32> to vector<8x1024xf32>
    %35 = arith.mulf %34, %33 : vector<8x1024xf32>
    %36 = arith.truncf %26 : vector<8x16xf32> to vector<8x16xbf16>
    %cst_20 = arith.constant dense<0.000000e+00> : vector<8x1024xf32>
    %37 = tpu.matmul %36, %6, %cst_20 {dimension_numbers = #tpu.dot_dimension_numbers<[1], [0], [0], [1], [0, 0, 1, 1], [], []>} : vector<8x16xbf16>, vector<16x1024xbf16>, vector<8x1024xf32> -> vector<8x1024xf32>
    %38 = arith.addf %35, %37 : vector<8x1024xf32>
    %c0_21 = arith.constant 0 : index
    %c0_22 = arith.constant 0 : index
    %39 = vector.load %arg8[%c0_21, %c0_22] : memref<8x1024xf32, #tpu.memory_space<vmem>>, vector<8x1024xf32>
    tpu.vector_store %arg8[%c0_21, %c0_22], %38 {strides = array<i32>} : memref<8x1024xf32, #tpu.memory_space<vmem>>, vector<8x1024xf32>,
    %c0_23 = arith.constant 0 : index
    %c0_24 = arith.constant 0 : index
    %40 = vector.load %arg6[%c0_23, %c0_24] : memref<8x1xf32, #tpu.memory_space<vmem>>, vector<8x1xf32>
    tpu.vector_store %arg6[%c0_23, %c0_24], %21 {strides = array<i32>} : memref<8x1xf32, #tpu.memory_space<vmem>>, vector<8x1xf32>,
    return
  }
  func.func @transform_0(%arg0: i32, %arg1: i32) -> (i32, i32) {
    %c0_i32 = arith.constant 0 : i32
    %c0_i32_0 = arith.constant 0 : i32
    %c0_i32_1 = arith.constant 0 : i32
    return %c0_i32, %c0_i32_0 : i32, i32
  }
  func.func @transform_1(%arg0: i32, %arg1: i32) -> (i32, i32) {
    %c0_i32 = arith.constant 0 : i32
    %c0_i32_0 = arith.constant 0 : i32
    %c0_i32_1 = arith.constant 0 : i32
    return %c0_i32, %c0_i32_0 : i32, i32
  }
  func.func @transform_2(%arg0: i32, %arg1: i32) -> (i32, i32) {
    %c0_i32 = arith.constant 0 : i32
    %c0_i32_0 = arith.constant 0 : i32
    %c0_i32_1 = arith.constant 0 : i32
    return %c0_i32, %c0_i32_0 : i32, i32
  }
  func.func @transform_3(%arg0: i32, %arg1: i32) -> (i32, i32) {
    %c1_i32 = arith.constant 1 : i32
    %0 = arith.muli %arg0, %c1_i32 : i32
    %1 = arith.addi %0, %arg1 : i32
    %c0_i32 = arith.constant 0 : i32
    %c0_i32_0 = arith.constant 0 : i32
    return %1, %c0_i32 : i32, i32
  }
  func.func @transform_4(%arg0: i32, %arg1: i32) -> (i32, i32) {
    %c0_i32 = arith.constant 0 : i32
    %c0_i32_0 = arith.constant 0 : i32
    return %arg0, %c0_i32 : i32, i32
  }
  func.func @transform_5(%arg0: i32, %arg1: i32) -> (i32, i32) {
    %c0_i32 = arith.constant 0 : i32
    %c0_i32_0 = arith.constant 0 : i32
    return %arg0, %c0_i32 : i32, i32
  }
  func.func @transform_6(%arg0: i32, %arg1: i32) -> (i32, i32) {
    %c0_i32 = arith.constant 0 : i32
    %c0_i32_0 = arith.constant 0 : i32
    return %arg0, %c0_i32 : i32, i32
  }
}

</mosaic_0001>

<llo_original>
// kernel: tpu_custom_call.1
$region0: #{tpu_custom_call.1}
  #allocation0 [shape = 'u32[]', space=smem, size = 0x4, offset = 0x4, fixed_abs, tag = 'smem constant byte address 0x4 - core index']
  #allocation1 [shape = 'u32[144,128]{1,0:T(1,128)}', space=vmem, size = 0x12000, scoped, tag = 'internal scratch']
  %s0 = inlined_call_operand.vmem [shape: f32[8,1], index: 0, kind: input, shape index: {}]
  %s1 = inlined_call_operand.vmem [shape: f32[8,1], index: 1, kind: input, shape index: {}]
  %s2 = inlined_call_operand.hbm [shape: bf16[8,1024], index: 2, kind: input, shape index: {}]
  %s3 = inlined_call_operand.hbm [shape: bf16[16,1024], index: 3, kind: input, shape index: {}]
  %s4 = inlined_call_operand.vmem [shape: f32[8,1], index: 4, kind: output, shape index: {0}]
  %s5 = inlined_call_operand.vmem [shape: f32[8,1], index: 5, kind: output, shape index: {1}]
  %s6 = inlined_call_operand.hbm [shape: f32[8,1024], index: 6, kind: output, shape index: {2}]
  %7 = xla_tuple %s4, %s5, %s6
  %s8 = sld [smem:[#allocation0]]
  $region54: #{tpu_custom_call.1} parent=0
    _
  %s10 = ssub.s32 1, %s8
  %s11 = scalar_select 0, %s10, %s8
  $region1: #{tpu_custom_call.1} parent=0
    #allocation2 [shape = 'u8[16384]{0}', space=vmem, size = 0x4000, scoped, tag = 'input window, operand 2, single buffered']
    #allocation3 [shape = 's32[1]{0}', space=sflag, size = 0x4, scoped, tag = 'scoped memory for tpu_custom_call.1']
    #allocation4 [shape = 's32[1]{0}', space=sflag, size = 0x4, scoped, tag = 'scoped memory for tpu_custom_call.1']
    #allocation5 [shape = 'u8[32768]{0}', space=vmem, size = 0x8000, scoped, tag = 'input window, operand 3, single buffered']
    #allocation6 [shape = 's32[1]{0}', space=sflag, size = 0x4, scoped, tag = 'scoped memory for tpu_custom_call.1']
    #allocation7 [shape = 'u8[32768]{0}', space=vmem, size = 0x8000, scoped, tag = 'output window, operand 2, single buffered']
    %12 = vsyncpa [#allocation3], 0
    %13 = vsyncpa [#allocation6], 0
    %14 = vsyncpa [#allocation4], 0
    // Predicated region
    $region2: #{tpu_custom_call.1} parent=1 // pred_check
      _
    $region3: #{tpu_custom_call.1} parent=1 // pred_check_branch
      %16 = sbr.rel (0) target = $region5
    $region4: #{tpu_custom_call.1} parent=1 // pred_region
      _
    $region5: #{tpu_custom_call.1} parent=1 // pred_fallthru
      _
    // Predicated region
    $region6: #{tpu_custom_call.1} parent=1 // pred_check
      _
    $region7: #{tpu_custom_call.1} parent=1 // pred_check_branch
      %18 = sbr.rel (0) target = $region9
    $region8: #{tpu_custom_call.1} parent=1 // pred_region
      _
    $region9: #{tpu_custom_call.1} parent=1 // pred_fallthru
      _
    // Predicated region
    $region10: #{tpu_custom_call.1} parent=1 // pred_check
      _
    $region11: #{tpu_custom_call.1} parent=1 // pred_check_branch
      %20 = sbr.rel (0) target = $region13
    $region12: #{tpu_custom_call.1} parent=1 // pred_region
      %s22 = ssub.s32 512, 512
      %23 = vsyncadd [#allocation3], %s22
      %s25 = sshll.u32 [#allocation2], 4
      %s26 = int_to_ptr.vmem [resolvable:$true] %s25
      %28 = dma.hbm_to_vmem [thread:$0]  %s2, 512, %s26, [#allocation3]
    $region13: #{tpu_custom_call.1} parent=1 // pred_fallthru
      _
    // Predicated region
    $region14: #{tpu_custom_call.1} parent=1 // pred_check
      _
    $region15: #{tpu_custom_call.1} parent=1 // pred_check_branch
      %30 = sbr.rel (0) target = $region17
    $region16: #{tpu_custom_call.1} parent=1 // pred_region
      %s31 = sadd.s32 0, 0
      %s32 = smul.u32 2, %s31
      %s34 = ssub.s32 1024, 1024
      %35 = vsyncadd [#allocation6], %s34
      %s36 = smul.addr %s32, 8
      %s37 = smul.addr %s36, 64
      %s38 = scalar_lea.hbm %s3, %s37
      %s39 = sshll.u32 [#allocation5], 4
      %s40 = int_to_ptr.vmem [resolvable:$true] %s39
      %45 = dma.hbm_to_vmem [thread:$0]  %s38, 1024, %s40, [#allocation6], 512, 512, 32
    $region17: #{tpu_custom_call.1} parent=1 // pred_fallthru
      _
    // Predicated region
    $region18: #{tpu_custom_call.1} parent=1 // pred_check
      _
    $region19: #{tpu_custom_call.1} parent=1 // pred_check_branch
      %47 = sbr.rel (0) target = $region21
    $region20: #{tpu_custom_call.1} parent=1 // pred_region
      %48 = dma.done [#allocation3], 512
    $region21: #{tpu_custom_call.1} parent=1 // pred_fallthru
      _
    // Predicated region
    $region22: #{tpu_custom_call.1} parent=1 // pred_check
      _
    $region23: #{tpu_custom_call.1} parent=1 // pred_check_branch
      %50 = sbr.rel (0) target = $region25
    $region24: #{tpu_custom_call.1} parent=1 // pred_region
      %51 = dma.done [#allocation6], 1024
    $region25: #{tpu_custom_call.1} parent=1 // pred_fallthru
      _
    %s52 = sadd.s32 0, 0
    %s53 = smul.u32 2, %s52
    %p56 = scmp.eq.s32.totalorder 0, 0
    // Predicated region
    $region26: #{tpu_custom_call.1} parent=1 // pred_check
      %p57 = pneg %p56
    $region27: #{tpu_custom_call.1} parent=1 // pred_check_branch
      %59 = sbr.rel (%p57) target = $region29
    $region28: #{tpu_custom_call.1} parent=1 // pred_region
      %vm60 = vcmask 7168
      %61 = vst.msk [vmem:[%s4] sm:$0xff] %vm60, -1e+30
      %62 = vst.msk [vmem:[%s5] sm:$0xff] %vm60, 0.0
      %63 = vst [vmem:[#allocation7] sm:$0xff] 0.0
      %64 = vst [vmem:[#allocation7 + $0x8] sm:$0xff] 0.0
      %65 = vst [vmem:[#allocation7 + $0x10] sm:$0xff] 0.0
      %66 = vst [vmem:[#allocation7 + $0x18] sm:$0xff] 0.0
      %67 = vst [vmem:[#allocation7 + $0x20] sm:$0xff] 0.0
      %68 = vst [vmem:[#allocation7 + $0x28] sm:$0xff] 0.0
      %69 = vst [vmem:[#allocation7 + $0x30] sm:$0xff] 0.0
      %70 = vst [vmem:[#allocation7 + $0x38] sm:$0xff] 0.0
    $region29: #{tpu_custom_call.1} parent=1 // pred_fallthru
      _
    %v71 = vld [vmem:[%s0] sm:$0xff]
    %v72 = vld [vmem:[%s1] sm:$0xff]
    %v73 = vld [vmem:[#allocation2] sm:$0xff]
    %v74 = vld [vmem:[#allocation2 + $0x8] sm:$0xff]
    %v75 = vld [vmem:[#allocation2 + $0x10] sm:$0xff]
    %v76 = vld [vmem:[#allocation2 + $0x18] sm:$0xff]
    %v77 = vld [vmem:[#allocation5] sm:$0xff]
    %v78 = vld [vmem:[#allocation5 + $0x8] sm:$0xff]
    %v79 = vld [vmem:[#allocation5 + $0x10] sm:$0xff]
    %v80 = vld [vmem:[#allocation5 + $0x18] sm:$0xff]
    %v81 = vld [vmem:[#allocation5 + $0x20] sm:$0xff]
    %v82 = vld [vmem:[#allocation5 + $0x28] sm:$0xff]
    %v83 = vld [vmem:[#allocation5 + $0x30] sm:$0xff]
    %v84 = vld [vmem:[#allocation5 + $0x38] sm:$0xff]
    %v85 = vmul.bf16 %v77, %v77
    %v86 = vmul.bf16 %v78, %v78
    %v87 = vmul.bf16 %v79, %v79
    %v88 = vmul.bf16 %v80, %v80
    %v89 = vmul.bf16 %v81, %v81
    %v90 = vmul.bf16 %v82, %v82
    %v91 = vmul.bf16 %v83, %v83
    %v92 = vmul.bf16 %v84, %v84
    %v101 = vunpack.c.l.b16 %v85
    %v102 = vunpack.c.h.b16 %v85
    %v103 = vunpack.c.l.b16 %v86
    %v104 = vunpack.c.h.b16 %v86
    %v105 = vunpack.c.l.b16 %v87
    %v106 = vunpack.c.h.b16 %v87
    %v107 = vunpack.c.l.b16 %v88
    %v108 = vunpack.c.h.b16 %v88
    %v109 = vunpack.c.l.b16 %v89
    %v110 = vunpack.c.h.b16 %v89
    %v111 = vunpack.c.l.b16 %v90
    %v112 = vunpack.c.h.b16 %v90
    %v113 = vunpack.c.l.b16 %v91
    %v114 = vunpack.c.h.b16 %v91
    %v115 = vunpack.c.l.b16 %v92
    %v116 = vunpack.c.h.b16 %v92
    %v117 = vpack.c.b16 %v109, %v101
    %v118 = vpack.c.b16 %v110, %v102
    %v119 = vpack.c.b16 %v111, %v103
    %v120 = vpack.c.b16 %v112, %v104
    %v121 = vpack.c.b16 %v113, %v105
    %v122 = vpack.c.b16 %v114, %v106
    %v123 = vpack.c.b16 %v115, %v107
    %v124 = vpack.c.b16 %v116, %v108
    %133 = vmatprep.subr.bf16.mxu0 0
    %134 = vmatpush1.bf16.xpose.msra.mxu0 0
    %135 = vmatprep.subr.bf16.mxu0 0
    %136 = vmatpush1.bf16.xpose.msra.mxu0 0
    %137 = vmatprep.subr.bf16.mxu0 0
    %138 = vmatpush1.bf16.xpose.msra.mxu0 0
    %139 = vmatprep.subr.bf16.mxu0 0
    %140 = vmatpush1.bf16.xpose.msra.mxu0 0
    %141 = vmatprep.subr.bf16.mxu0 0
    %142 = vmatpush1.bf16.xpose.msra.mxu0 0
    %143 = vmatprep.subr.bf16.mxu0 0
    %144 = vmatpush1.bf16.xpose.msra.mxu0 0
    %145 = vmatprep.subr.bf16.mxu0 0
    %146 = vmatpush1.bf16.xpose.msra.mxu0 0
    %147 = vmatprep.subr.bf16.mxu0 %v118
    %148 = vmatpush1.bf16.xpose.msra.mxu0 %v117
    %149 = vmatprep.subr.bf16.mxu0 0
    %150 = vmatpush2.bf16.xpose.msra.mxu0 0
    %151 = vmatprep.subr.bf16.mxu0 0
    %152 = vmatpush2.bf16.xpose.msra.mxu0 0
    %153 = vmatprep.subr.bf16.mxu0 0
    %154 = vmatpush2.bf16.xpose.msra.mxu0 0
    %155 = vmatprep.subr.bf16.mxu0 0
    %156 = vmatpush2.bf16.xpose.msra.mxu0 0
    %157 = vmatprep.subr.bf16.mxu0 0
    %158 = vmatpush2.bf16.xpose.msra.mxu0 0
    %159 = vmatprep.subr.bf16.mxu0 0
    %160 = vmatpush2.bf16.xpose.msra.mxu0 0
    %161 = vmatprep.subr.bf16.mxu0 0
    %162 = vmatpush2.bf16.xpose.msra.mxu0 0
    %163 = vmatprep.subr.bf16.mxu0 0
    %164 = vmatpush2.bf16.xpose.msra.mxu0 0
    %165 = vmatprep.mubr.bf16.mxu0 1065369472
    %166 = vmatmul.mubr.bf16.gmra.mxu0 1065369472
    %v167 = vpop.f32.mrf.mxu0
    %v168 = vadd.f32 0.0, %v167
    %v169 = vpop.f32.mrf.mxu0
    %v170 = vpop.f32.mrf.mxu0
    %v171 = vpop.f32.mrf.mxu0
    %172 = vdwg.mxu0
    %173 = vmatprep.subr.bf16.mxu0 0
    %174 = vmatpush1.bf16.xpose.msra.mxu0 0
    %175 = vmatprep.subr.bf16.mxu0 0
    %176 = vmatpush1.bf16.xpose.msra.mxu0 0
    %177 = vmatprep.subr.bf16.mxu0 0
    %178 = vmatpush1.bf16.xpose.msra.mxu0 0
    %179 = vmatprep.subr.bf16.mxu0 0
    %180 = vmatpush1.bf16.xpose.msra.mxu0 0
    %181 = vmatprep.subr.bf16.mxu0 0
    %182 = vmatpush1.bf16.xpose.msra.mxu0 0
    %183 = vmatprep.subr.bf16.mxu0 0
    %184 = vmatpush1.bf16.xpose.msra.mxu0 0
    %185 = vmatprep.subr.bf16.mxu0 0
    %186 = vmatpush1.bf16.xpose.msra.mxu0 0
    %187 = vmatprep.subr.bf16.mxu0 %v120
    %188 = vmatpush1.bf16.xpose.msra.mxu0 %v119
    %189 = vmatprep.subr.bf16.mxu0 0
    %190 = vmatpush2.bf16.xpose.msra.mxu0 0
    %191 = vmatprep.subr.bf16.mxu0 0
    %192 = vmatpush2.bf16.xpose.msra.mxu0 0
    %193 = vmatprep.subr.bf16.mxu0 0
    %194 = vmatpush2.bf16.xpose.msra.mxu0 0
    %195 = vmatprep.subr.bf16.mxu0 0
    %196 = vmatpush2.bf16.xpose.msra.mxu0 0
    %197 = vmatprep.subr.bf16.mxu0 0
    %198 = vmatpush2.bf16.xpose.msra.mxu0 0
    %199 = vmatprep.subr.bf16.mxu0 0
    %200 = vmatpush2.bf16.xpose.msra.mxu0 0
    %201 = vmatprep.subr.bf16.mxu0 0
    %202 = vmatpush2.bf16.xpose.msra.mxu0 0
    %203 = vmatprep.subr.bf16.mxu0 0
    %204 = vmatpush2.bf16.xpose.msra.mxu0 0
    %205 = vmatprep.mubr.bf16.mxu0 1065369472
    %206 = vmatmul.mubr.bf16.gmra.mxu0 1065369472
    %v207 = vpop.f32.mrf.mxu0
    %v208 = vadd.f32 %v168, %v207
    %v209 = vpop.f32.mrf.mxu0
    %v210 = vpop.f32.mrf.mxu0
    %v211 = vpop.f32.mrf.mxu0
    %212 = vdwg.mxu0
    %213 = vmatprep.subr.bf16.mxu0 0
    %214 = vmatpush1.bf16.xpose.msra.mxu0 0
    %215 = vmatprep.subr.bf16.mxu0 0
    %216 = vmatpush1.bf16.xpose.msra.mxu0 0
    %217 = vmatprep.subr.bf16.mxu0 0
    %218 = vmatpush1.bf16.xpose.msra.mxu0 0
    %219 = vmatprep.subr.bf16.mxu0 0
    %220 = vmatpush1.bf16.xpose.msra.mxu0 0
    %221 = vmatprep.subr.bf16.mxu0 0
    %222 = vmatpush1.bf16.xpose.msra.mxu0 0
    %223 = vmatprep.subr.bf16.mxu0 0
    %224 = vmatpush1.bf16.xpose.msra.mxu0 0
    %225 = vmatprep.subr.bf16.mxu0 0
    %226 = vmatpush1.bf16.xpose.msra.mxu0 0
    %227 = vmatprep.subr.bf16.mxu0 %v122
    %228 = vmatpush1.bf16.xpose.msra.mxu0 %v121
    %229 = vmatprep.subr.bf16.mxu0 0
    %230 = vmatpush2.bf16.xpose.msra.mxu0 0
    %231 = vmatprep.subr.bf16.mxu0 0
    %232 = vmatpush2.bf16.xpose.msra.mxu0 0
    %233 = vmatprep.subr.bf16.mxu0 0
    %234 = vmatpush2.bf16.xpose.msra.mxu0 0
    %235 = vmatprep.subr.bf16.mxu0 0
    %236 = vmatpush2.bf16.xpose.msra.mxu0 0
    %237 = vmatprep.subr.bf16.mxu0 0
    %238 = vmatpush2.bf16.xpose.msra.mxu0 0
    %239 = vmatprep.subr.bf16.mxu0 0
    %240 = vmatpush2.bf16.xpose.msra.mxu0 0
    %241 = vmatprep.subr.bf16.mxu0 0
    %242 = vmatpush2.bf16.xpose.msra.mxu0 0
    %243 = vmatprep.subr.bf16.mxu0 0
    %244 = vmatpush2.bf16.xpose.msra.mxu0 0
    %245 = vmatprep.mubr.bf16.mxu0 1065369472
    %246 = vmatmul.mubr.bf16.gmra.mxu0 1065369472
    %v247 = vpop.f32.mrf.mxu0
    %v248 = vadd.f32 %v208, %v247
    %v249 = vpop.f32.mrf.mxu0
    %v250 = vpop.f32.mrf.mxu0
    %v251 = vpop.f32.mrf.mxu0
    %252 = vdwg.mxu0
    %253 = vmatprep.subr.bf16.mxu0 0
    %254 = vmatpush1.bf16.xpose.msra.mxu0 0
    %255 = vmatprep.subr.bf16.mxu0 0
    %256 = vmatpush1.bf16.xpose.msra.mxu0 0
    %257 = vmatprep.subr.bf16.mxu0 0
    %258 = vmatpush1.bf16.xpose.msra.mxu0 0
    %259 = vmatprep.subr.bf16.mxu0 0
    %260 = vmatpush1.bf16.xpose.msra.mxu0 0
    %261 = vmatprep.subr.bf16.mxu0 0
    %262 = vmatpush1.bf16.xpose.msra.mxu0 0
    %263 = vmatprep.subr.bf16.mxu0 0
    %264 = vmatpush1.bf16.xpose.msra.mxu0 0
    %265 = vmatprep.subr.bf16.mxu0 0
    %266 = vmatpush1.bf16.xpose.msra.mxu0 0
    %267 = vmatprep.subr.bf16.mxu0 %v124
    %268 = vmatpush1.bf16.xpose.msra.mxu0 %v123
    %269 = vmatprep.subr.bf16.mxu0 0
    %270 = vmatpush2.bf16.xpose.msra.mxu0 0
    %271 = vmatprep.subr.bf16.mxu0 0
    %272 = vmatpush2.bf16.xpose.msra.mxu0 0
    %273 = vmatprep.subr.bf16.mxu0 0
    %274 = vmatpush2.bf16.xpose.msra.mxu0 0
    %275 = vmatprep.subr.bf16.mxu0 0
    %276 = vmatpush2.bf16.xpose.msra.mxu0 0
    %277 = vmatprep.subr.bf16.mxu0 0
    %278 = vmatpush2.bf16.xpose.msra.mxu0 0
    %279 = vmatprep.subr.bf16.mxu0 0
    %280 = vmatpush2.bf16.xpose.msra.mxu0 0
    %281 = vmatprep.subr.bf16.mxu0 0
    %282 = vmatpush2.bf16.xpose.msra.mxu0 0
    %283 = vmatprep.subr.bf16.mxu0 0
    %284 = vmatpush2.bf16.xpose.msra.mxu0 0
    %285 = vmatprep.mubr.bf16.mxu0 1065369472
    %286 = vmatmul.mubr.bf16.gmra.mxu0 1065369472
    %v287 = vpop.f32.mrf.mxu0
    %v288 = vadd.f32 %v248, %v287
    %v289 = vpop.f32.mrf.mxu0
    %v290 = vpop.f32.mrf.mxu0
    %v291 = vpop.f32.mrf.mxu0
    %292 = vdwg.mxu0
    %v297 = vunpack.c.l.b16 %v73
    %v298 = vunpack.c.h.b16 %v73
    %v299 = vunpack.c.l.b16 %v74
    %v300 = vunpack.c.h.b16 %v74
    %v301 = vunpack.c.l.b16 %v75
    %v302 = vunpack.c.h.b16 %v75
    %v303 = vunpack.c.l.b16 %v76
    %v304 = vunpack.c.h.b16 %v76
    %v305 = vpack.c.b16 %v297, %v297
    %v306 = vpack.c.b16 %v298, %v298
    %v307 = vpack.c.b16 %v299, %v299
    %v308 = vpack.c.b16 %v300, %v300
    %v309 = vpack.c.b16 %v301, %v301
    %v310 = vpack.c.b16 %v302, %v302
    %v311 = vpack.c.b16 %v303, %v303
    %v312 = vpack.c.b16 %v304, %v304
    %v329 = vunpack.c.l.b16 %v77
    %v330 = vunpack.c.h.b16 %v77
    %v331 = vunpack.c.l.b16 %v78
    %v332 = vunpack.c.h.b16 %v78
    %v333 = vunpack.c.l.b16 %v79
    %v334 = vunpack.c.h.b16 %v79
    %v335 = vunpack.c.l.b16 %v80
    %v336 = vunpack.c.h.b16 %v80
    %v337 = vunpack.c.l.b16 %v81
    %v338 = vunpack.c.h.b16 %v81
    %v339 = vunpack.c.l.b16 %v82
    %v340 = vunpack.c.h.b16 %v82
    %v341 = vunpack.c.l.b16 %v83
    %v342 = vunpack.c.h.b16 %v83
    %v343 = vunpack.c.l.b16 %v84
    %v344 = vunpack.c.h.b16 %v84
    %v345 = vpack.c.b16 %v337, %v329
    %v346 = vpack.c.b16 %v338, %v330
    %v347 = vpack.c.b16 %v339, %v331
    %v348 = vpack.c.b16 %v340, %v332
    %v349 = vpack.c.b16 %v341, %v333
    %v350 = vpack.c.b16 %v342, %v334
    %v351 = vpack.c.b16 %v343, %v335
    %v352 = vpack.c.b16 %v344, %v336
    %361 = vmatprep.subr.bf16.mxu0 0
    %362 = vmatpush1.bf16.xpose.msra.mxu0 0
    %363 = vmatprep.subr.bf16.mxu0 0
    %364 = vmatpush1.bf16.xpose.msra.mxu0 0
    %365 = vmatprep.subr.bf16.mxu0 0
    %366 = vmatpush1.bf16.xpose.msra.mxu0 0
    %367 = vmatprep.subr.bf16.mxu0 0
    %368 = vmatpush1.bf16.xpose.msra.mxu0 0
    %369 = vmatprep.subr.bf16.mxu0 0
    %370 = vmatpush1.bf16.xpose.msra.mxu0 0
    %371 = vmatprep.subr.bf16.mxu0 0
    %372 = vmatpush1.bf16.xpose.msra.mxu0 0
    %373 = vmatprep.subr.bf16.mxu0 0
    %374 = vmatpush1.bf16.xpose.msra.mxu0 0
    %375 = vmatprep.subr.bf16.mxu0 %v346
    %376 = vmatpush1.bf16.xpose.msra.mxu0 %v345
    %377 = vmatprep.subr.bf16.mxu0 0
    %378 = vmatpush2.bf16.xpose.msra.mxu0 0
    %379 = vmatprep.subr.bf16.mxu0 0
    %380 = vmatpush2.bf16.xpose.msra.mxu0 0
    %381 = vmatprep.subr.bf16.mxu0 0
    %382 = vmatpush2.bf16.xpose.msra.mxu0 0
    %383 = vmatprep.subr.bf16.mxu0 0
    %384 = vmatpush2.bf16.xpose.msra.mxu0 0
    %385 = vmatprep.subr.bf16.mxu0 0
    %386 = vmatpush2.bf16.xpose.msra.mxu0 0
    %387 = vmatprep.subr.bf16.mxu0 0
    %388 = vmatpush2.bf16.xpose.msra.mxu0 0
    %389 = vmatprep.subr.bf16.mxu0 0
    %390 = vmatpush2.bf16.xpose.msra.mxu0 0
    %391 = vmatprep.subr.bf16.mxu0 0
    %392 = vmatpush2.bf16.xpose.msra.mxu0 0
    %393 = vmatprep.mubr.bf16.mxu0 %v306
    %394 = vmatmul.mubr.bf16.gmra.mxu0 %v305
    %v395 = vpop.f32.mrf.mxu0
    %v396 = vadd.f32 0.0, %v395
    %v397 = vpop.f32.mrf.mxu0
    %v398 = vpop.f32.mrf.mxu0
    %v399 = vpop.f32.mrf.mxu0
    %400 = vdwg.mxu0
    %401 = vmatprep.subr.bf16.mxu0 0
    %402 = vmatpush1.bf16.xpose.msra.mxu0 0
    %403 = vmatprep.subr.bf16.mxu0 0
    %404 = vmatpush1.bf16.xpose.msra.mxu0 0
    %405 = vmatprep.subr.bf16.mxu0 0
    %406 = vmatpush1.bf16.xpose.msra.mxu0 0
    %407 = vmatprep.subr.bf16.mxu0 0
    %408 = vmatpush1.bf16.xpose.msra.mxu0 0
    %409 = vmatprep.subr.bf16.mxu0 0
    %410 = vmatpush1.bf16.xpose.msra.mxu0 0
    %411 = vmatprep.subr.bf16.mxu0 0
    %412 = vmatpush1.bf16.xpose.msra.mxu0 0
    %413 = vmatprep.subr.bf16.mxu0 0
    %414 = vmatpush1.bf16.xpose.msra.mxu0 0
    %415 = vmatprep.subr.bf16.mxu0 %v348
    %416 = vmatpush1.bf16.xpose.msra.mxu0 %v347
    %417 = vmatprep.subr.bf16.mxu0 0
    %418 = vmatpush2.bf16.xpose.msra.mxu0 0
    %419 = vmatprep.subr.bf16.mxu0 0
    %420 = vmatpush2.bf16.xpose.msra.mxu0 0
    %421 = vmatprep.subr.bf16.mxu0 0
    %422 = vmatpush2.bf16.xpose.msra.mxu0 0
    %423 = vmatprep.subr.bf16.mxu0 0
    %424 = vmatpush2.bf16.xpose.msra.mxu0 0
    %425 = vmatprep.subr.bf16.mxu0 0
    %426 = vmatpush2.bf16.xpose.msra.mxu0 0
    %427 = vmatprep.subr.bf16.mxu0 0
    %428 = vmatpush2.bf16.xpose.msra.mxu0 0
    %429 = vmatprep.subr.bf16.mxu0 0
    %430 = vmatpush2.bf16.xpose.msra.mxu0 0
    %431 = vmatprep.subr.bf16.mxu0 0
    %432 = vmatpush2.bf16.xpose.msra.mxu0 0
    %433 = vmatprep.mubr.bf16.mxu0 %v308
    %434 = vmatmul.mubr.bf16.gmra.mxu0 %v307
    %v435 = vpop.f32.mrf.mxu0
    %v436 = vadd.f32 %v396, %v435
    %v437 = vpop.f32.mrf.mxu0
    %v438 = vpop.f32.mrf.mxu0
    %v439 = vpop.f32.mrf.mxu0
    %440 = vdwg.mxu0
    %441 = vmatprep.subr.bf16.mxu0 0
    %442 = vmatpush1.bf16.xpose.msra.mxu0 0
    %443 = vmatprep.subr.bf16.mxu0 0
    %444 = vmatpush1.bf16.xpose.msra.mxu0 0
    %445 = vmatprep.subr.bf16.mxu0 0
    %446 = vmatpush1.bf16.xpose.msra.mxu0 0
    %447 = vmatprep.subr.bf16.mxu0 0
    %448 = vmatpush1.bf16.xpose.msra.mxu0 0
    %449 = vmatprep.subr.bf16.mxu0 0
    %450 = vmatpush1.bf16.xpose.msra.mxu0 0
    %451 = vmatprep.subr.bf16.mxu0 0
    %452 = vmatpush1.bf16.xpose.msra.mxu0 0
    %453 = vmatprep.subr.bf16.mxu0 0
    %454 = vmatpush1.bf16.xpose.msra.mxu0 0
    %455 = vmatprep.subr.bf16.mxu0 %v350
    %456 = vmatpush1.bf16.xpose.msra.mxu0 %v349
    %457 = vmatprep.subr.bf16.mxu0 0
    %458 = vmatpush2.bf16.xpose.msra.mxu0 0
    %459 = vmatprep.subr.bf16.mxu0 0
    %460 = vmatpush2.bf16.xpose.msra.mxu0 0
    %461 = vmatprep.subr.bf16.mxu0 0
    %462 = vmatpush2.bf16.xpose.msra.mxu0 0
    %463 = vmatprep.subr.bf16.mxu0 0
    %464 = vmatpush2.bf16.xpose.msra.mxu0 0
    %465 = vmatprep.subr.bf16.mxu0 0
    %466 = vmatpush2.bf16.xpose.msra.mxu0 0
    %467 = vmatprep.subr.bf16.mxu0 0
    %468 = vmatpush2.bf16.xpose.msra.mxu0 0
    %469 = vmatprep.subr.bf16.mxu0 0
    %470 = vmatpush2.bf16.xpose.msra.mxu0 0
    %471 = vmatprep.subr.bf16.mxu0 0
    %472 = vmatpush2.bf16.xpose.msra.mxu0 0
    %473 = vmatprep.mubr.bf16.mxu0 %v310
    %474 = vmatmul.mubr.bf16.gmra.mxu0 %v309
    %v475 = vpop.f32.mrf.mxu0
    %v476 = vadd.f32 %v436, %v475
    %v477 = vpop.f32.mrf.mxu0
    %v478 = vpop.f32.mrf.mxu0
    %v479 = vpop.f32.mrf.mxu0
    %480 = vdwg.mxu0
    %481 = vmatprep.subr.bf16.mxu0 0
    %482 = vmatpush1.bf16.xpose.msra.mxu0 0
    %483 = vmatprep.subr.bf16.mxu0 0
    %484 = vmatpush1.bf16.xpose.msra.mxu0 0
    %485 = vmatprep.subr.bf16.mxu0 0
    %486 = vmatpush1.bf16.xpose.msra.mxu0 0
    %487 = vmatprep.subr.bf16.mxu0 0
    %488 = vmatpush1.bf16.xpose.msra.mxu0 0
    %489 = vmatprep.subr.bf16.mxu0 0
    %490 = vmatpush1.bf16.xpose.msra.mxu0 0
    %491 = vmatprep.subr.bf16.mxu0 0
    %492 = vmatpush1.bf16.xpose.msra.mxu0 0
    %493 = vmatprep.subr.bf16.mxu0 0
    %494 = vmatpush1.bf16.xpose.msra.mxu0 0
    %495 = vmatprep.subr.bf16.mxu0 %v352
    %496 = vmatpush1.bf16.xpose.msra.mxu0 %v351
    %497 = vmatprep.subr.bf16.mxu0 0
    %498 = vmatpush2.bf16.xpose.msra.mxu0 0
    %499 = vmatprep.subr.bf16.mxu0 0
    %500 = vmatpush2.bf16.xpose.msra.mxu0 0
    %501 = vmatprep.subr.bf16.mxu0 0
    %502 = vmatpush2.bf16.xpose.msra.mxu0 0
    %503 = vmatprep.subr.bf16.mxu0 0
    %504 = vmatpush2.bf16.xpose.msra.mxu0 0
    %505 = vmatprep.subr.bf16.mxu0 0
    %506 = vmatpush2.bf16.xpose.msra.mxu0 0
    %507 = vmatprep.subr.bf16.mxu0 0
    %508 = vmatpush2.bf16.xpose.msra.mxu0 0
    %509 = vmatprep.subr.bf16.mxu0 0
    %510 = vmatpush2.bf16.xpose.msra.mxu0 0
    %511 = vmatprep.subr.bf16.mxu0 0
    %512 = vmatpush2.bf16.xpose.msra.mxu0 0
    %513 = vmatprep.mubr.bf16.mxu0 %v312
    %514 = vmatmul.mubr.bf16.gmra.mxu0 %v311
    %v515 = vpop.f32.mrf.mxu0
    %v516 = vadd.f32 %v476, %v515
    %v517 = vpop.f32.mrf.mxu0
    %v518 = vpop.f32.mrf.mxu0
    %v519 = vpop.f32.mrf.mxu0
    %520 = vdwg.mxu0
    %522 = vset.pattern.permute.xlu0 0
    %523 = vperm.xlu0 %522, %v71
    %v524 = vpop.permute.xlu0 %523
    %v526 = vmul.f32 %v524, %v516
    %528 = vset.pattern.permute.xlu0 0
    %529 = vperm.xlu0 %528, %v72
    %v530 = vpop.permute.xlu0 %529
    %v532 = vlaneseq
    %v533 = vshrl.u32 %v532, 7
    %v534 = vsub.s32 0, %v533
    %v535 = vrot.slane %v288, %v534
    %v536 = vmul.f32 %v530, %v535
    %v537 = vsub.f32 %v526, %v536
    %v538 = vld [vmem:[%s4] sm:$0xff]
    %vm539 = vcmask 130048
    %v540 = vsel %vm539, %v537, -inf
    %541 = vmax.xlane.f32.xlu0 %v540
    %v542 = vpop.xlane.xlu0 %541
    %v543 = vmax.f32 %v538, %v542
    %v544 = vsub.f32 %v538, %v543
    %v545 = vmul.f32 %v544, 1.442695
    %v546 = vpow.pop %v545
    %548 = vset.pattern.permute.xlu0 0
    %549 = vperm.xlu0 %548, %v543
    %v550 = vpop.permute.xlu0 %549
    %v552 = vsub.f32 %v537, %v550
    %v553 = vmul.f32 %v552, 1.442695
    %v554 = vpow.pop %v553
    %v555 = vld [vmem:[%s5] sm:$0xff]
    %v556 = vmul.f32 %v546, %v555
    %v557 = vsel %vm539, %v554, 0.0
    %558 = vadd.xlane.f32.xlu0 %v557
    %v559 = vpop.xlane.xlu0 %558
    %v560 = vadd.f32 %v556, %v559
    %vm561 = vcmask 7168
    %562 = vst.msk [vmem:[%s5] sm:$0xff] %vm561, %v560
    %v563 = vld [vmem:[#allocation7] sm:$0xff]
    %v564 = vld [vmem:[#allocation7 + $0x8] sm:$0xff]
    %v565 = vld [vmem:[#allocation7 + $0x10] sm:$0xff]
    %v566 = vld [vmem:[#allocation7 + $0x18] sm:$0xff]
    %v567 = vld [vmem:[#allocation7 + $0x20] sm:$0xff]
    %v568 = vld [vmem:[#allocation7 + $0x28] sm:$0xff]
    %v569 = vld [vmem:[#allocation7 + $0x30] sm:$0xff]
    %v570 = vld [vmem:[#allocation7 + $0x38] sm:$0xff]
    %572 = vset.pattern.permute.xlu0 0
    %573 = vperm.xlu0 %572, %v546
    %v574 = vpop.permute.xlu0 %573
    %v576 = vmul.f32 %v574, %v563
    %v577 = vmul.f32 %v574, %v564
    %v578 = vmul.f32 %v574, %v565
    %v579 = vmul.f32 %v574, %v566
    %v580 = vmul.f32 %v574, %v567
    %v581 = vmul.f32 %v574, %v568
    %v582 = vmul.f32 %v574, %v569
    %v583 = vmul.f32 %v574, %v570
    %v584 = vpack.c.bf16 %v554, %v554
    %v586 = vsel %vm539, %v584, 0
    %588 = vmatprep.subr.bf16.mxu0 0
    %589 = vmatpush1.bf16.msra.mxu0 0
    %590 = vmatprep.subr.bf16.mxu0 0
    %591 = vmatpush1.bf16.msra.mxu0 0
    %592 = vmatprep.subr.bf16.mxu0 0
    %593 = vmatpush1.bf16.msra.mxu0 0
    %594 = vmatprep.subr.bf16.mxu0 0
    %595 = vmatpush1.bf16.msra.mxu0 0
    %596 = vmatprep.subr.bf16.mxu0 0
    %597 = vmatpush1.bf16.msra.mxu0 0
    %598 = vmatprep.subr.bf16.mxu0 0
    %599 = vmatpush1.bf16.msra.mxu0 0
    %600 = vmatprep.subr.bf16.mxu0 0
    %601 = vmatpush1.bf16.msra.mxu0 0
    %602 = vmatprep.subr.bf16.mxu0 %v346
    %603 = vmatpush1.bf16.msra.mxu0 %v345
    %604 = vmatprep.subr.bf16.mxu0 0
    %605 = vmatpush2.bf16.msra.mxu0 0
    %606 = vmatprep.subr.bf16.mxu0 0
    %607 = vmatpush2.bf16.msra.mxu0 0
    %608 = vmatprep.subr.bf16.mxu0 0
    %609 = vmatpush2.bf16.msra.mxu0 0
    %610 = vmatprep.subr.bf16.mxu0 0
    %611 = vmatpush2.bf16.msra.mxu0 0
    %612 = vmatprep.subr.bf16.mxu0 0
    %613 = vmatpush2.bf16.msra.mxu0 0
    %614 = vmatprep.subr.bf16.mxu0 0
    %615 = vmatpush2.bf16.msra.mxu0 0
    %616 = vmatprep.subr.bf16.mxu0 0
    %617 = vmatpush2.bf16.msra.mxu0 0
    %618 = vmatprep.subr.bf16.mxu0 0
    %619 = vmatpush2.bf16.msra.mxu0 0
    %620 = vmatprep.mubr.bf16.mxu0 0
    %621 = vmatmul.mubr.bf16.gmra.mxu0 %v586
    %v622 = vpop.f32.mrf.mxu0
    %v623 = vadd.f32 0.0, %v622
    %v624 = vpop.f32.mrf.mxu0
    %v625 = vadd.f32 0.0, %v624
    %v626 = vpop.f32.mrf.mxu0
    %v627 = vpop.f32.mrf.mxu0
    %628 = vdwg.mxu0
    %629 = vmatprep.subr.bf16.mxu0 0
    %630 = vmatpush1.bf16.msra.mxu0 0
    %631 = vmatprep.subr.bf16.mxu0 0
    %632 = vmatpush1.bf16.msra.mxu0 0
    %633 = vmatprep.subr.bf16.mxu0 0
    %634 = vmatpush1.bf16.msra.mxu0 0
    %635 = vmatprep.subr.bf16.mxu0 0
    %636 = vmatpush1.bf16.msra.mxu0 0
    %637 = vmatprep.subr.bf16.mxu0 0
    %638 = vmatpush1.bf16.msra.mxu0 0
    %639 = vmatprep.subr.bf16.mxu0 0
    %640 = vmatpush1.bf16.msra.mxu0 0
    %641 = vmatprep.subr.bf16.mxu0 0
    %642 = vmatpush1.bf16.msra.mxu0 0
    %643 = vmatprep.subr.bf16.mxu0 %v348
    %644 = vmatpush1.bf16.msra.mxu0 %v347
    %645 = vmatprep.subr.bf16.mxu0 0
    %646 = vmatpush2.bf16.msra.mxu0 0
    %647 = vmatprep.subr.bf16.mxu0 0
    %648 = vmatpush2.bf16.msra.mxu0 0
    %649 = vmatprep.subr.bf16.mxu0 0
    %650 = vmatpush2.bf16.msra.mxu0 0
    %651 = vmatprep.subr.bf16.mxu0 0
    %652 = vmatpush2.bf16.msra.mxu0 0
    %653 = vmatprep.subr.bf16.mxu0 0
    %654 = vmatpush2.bf16.msra.mxu0 0
    %655 = vmatprep.subr.bf16.mxu0 0
    %656 = vmatpush2.bf16.msra.mxu0 0
    %657 = vmatprep.subr.bf16.mxu0 0
    %658 = vmatpush2.bf16.msra.mxu0 0
    %659 = vmatprep.subr.bf16.mxu0 0
    %660 = vmatpush2.bf16.msra.mxu0 0
    %661 = vmatprep.mubr.bf16.mxu0 0
    %662 = vmatmul.mubr.bf16.gmra.mxu0 %v586
    %v663 = vpop.f32.mrf.mxu0
    %v664 = vadd.f32 0.0, %v663
    %v665 = vpop.f32.mrf.mxu0
    %v666 = vadd.f32 0.0, %v665
    %v667 = vpop.f32.mrf.mxu0
    %v668 = vpop.f32.mrf.mxu0
    %669 = vdwg.mxu0
    %670 = vmatprep.subr.bf16.mxu0 0
    %671 = vmatpush1.bf16.msra.mxu0 0
    %672 = vmatprep.subr.bf16.mxu0 0
    %673 = vmatpush1.bf16.msra.mxu0 0
    %674 = vmatprep.subr.bf16.mxu0 0
    %675 = vmatpush1.bf16.msra.mxu0 0
    %676 = vmatprep.subr.bf16.mxu0 0
    %677 = vmatpush1.bf16.msra.mxu0 0
    %678 = vmatprep.subr.bf16.mxu0 0
    %679 = vmatpush1.bf16.msra.mxu0 0
    %680 = vmatprep.subr.bf16.mxu0 0
    %681 = vmatpush1.bf16.msra.mxu0 0
    %682 = vmatprep.subr.bf16.mxu0 0
    %683 = vmatpush1.bf16.msra.mxu0 0
    %684 = vmatprep.subr.bf16.mxu0 %v350
    %685 = vmatpush1.bf16.msra.mxu0 %v349
    %686 = vmatprep.subr.bf16.mxu0 0
    %687 = vmatpush2.bf16.msra.mxu0 0
    %688 = vmatprep.subr.bf16.mxu0 0
    %689 = vmatpush2.bf16.msra.mxu0 0
    %690 = vmatprep.subr.bf16.mxu0 0
    %691 = vmatpush2.bf16.msra.mxu0 0
    %692 = vmatprep.subr.bf16.mxu0 0
    %693 = vmatpush2.bf16.msra.mxu0 0
    %694 = vmatprep.subr.bf16.mxu0 0
    %695 = vmatpush2.bf16.msra.mxu0 0
    %696 = vmatprep.subr.bf16.mxu0 0
    %697 = vmatpush2.bf16.msra.mxu0 0
    %698 = vmatprep.subr.bf16.mxu0 0
    %699 = vmatpush2.bf16.msra.mxu0 0
    %700 = vmatprep.subr.bf16.mxu0 0
    %701 = vmatpush2.bf16.msra.mxu0 0
    %702 = vmatprep.mubr.bf16.mxu0 0
    %703 = vmatmul.mubr.bf16.gmra.mxu0 %v586
    %v704 = vpop.f32.mrf.mxu0
    %v705 = vadd.f32 0.0, %v704
    %v706 = vpop.f32.mrf.mxu0
    %v707 = vadd.f32 0.0, %v706
    %v708 = vpop.f32.mrf.mxu0
    %v709 = vpop.f32.mrf.mxu0
    %710 = vdwg.mxu0
    %711 = vmatprep.subr.bf16.mxu0 0
    %712 = vmatpush1.bf16.msra.mxu0 0
    %713 = vmatprep.subr.bf16.mxu0 0
    %714 = vmatpush1.bf16.msra.mxu0 0
    %715 = vmatprep.subr.bf16.mxu0 0
    %716 = vmatpush1.bf16.msra.mxu0 0
    %717 = vmatprep.subr.bf16.mxu0 0
    %718 = vmatpush1.bf16.msra.mxu0 0
    %719 = vmatprep.subr.bf16.mxu0 0
    %720 = vmatpush1.bf16.msra.mxu0 0
    %721 = vmatprep.subr.bf16.mxu0 0
    %722 = vmatpush1.bf16.msra.mxu0 0
    %723 = vmatprep.subr.bf16.mxu0 0
    %724 = vmatpush1.bf16.msra.mxu0 0
    %725 = vmatprep.subr.bf16.mxu0 %v352
    %726 = vmatpush1.bf16.msra.mxu0 %v351
    %727 = vmatprep.subr.bf16.mxu0 0
    %728 = vmatpush2.bf16.msra.mxu0 0
    %729 = vmatprep.subr.bf16.mxu0 0
    %730 = vmatpush2.bf16.msra.mxu0 0
    %731 = vmatprep.subr.bf16.mxu0 0
    %732 = vmatpush2.bf16.msra.mxu0 0
    %733 = vmatprep.subr.bf16.mxu0 0
    %734 = vmatpush2.bf16.msra.mxu0 0
    %735 = vmatprep.subr.bf16.mxu0 0
    %736 = vmatpush2.bf16.msra.mxu0 0
    %737 = vmatprep.subr.bf16.mxu0 0
    %738 = vmatpush2.bf16.msra.mxu0 0
    %739 = vmatprep.subr.bf16.mxu0 0
    %740 = vmatpush2.bf16.msra.mxu0 0
    %741 = vmatprep.subr.bf16.mxu0 0
    %742 = vmatpush2.bf16.msra.mxu0 0
    %743 = vmatprep.mubr.bf16.mxu0 0
    %744 = vmatmul.mubr.bf16.gmra.mxu0 %v586
    %v745 = vpop.f32.mrf.mxu0
    %v746 = vadd.f32 0.0, %v745
    %v747 = vpop.f32.mrf.mxu0
    %v748 = vadd.f32 0.0, %v747
    %v749 = vpop.f32.mrf.mxu0
    %v750 = vpop.f32.mrf.mxu0
    %751 = vdwg.mxu0
    %v752 = vadd.f32 %v576, %v623
    %v753 = vadd.f32 %v577, %v625
    %v754 = vadd.f32 %v578, %v664
    %v755 = vadd.f32 %v579, %v666
    %v756 = vadd.f32 %v580, %v705
    %v757 = vadd.f32 %v581, %v707
    %v758 = vadd.f32 %v582, %v746
    %v759 = vadd.f32 %v583, %v748
    %760 = vst [vmem:[#allocation7] sm:$0xff] %v752
    %761 = vst [vmem:[#allocation7 + $0x8] sm:$0xff] %v753
    %762 = vst [vmem:[#allocation7 + $0x10] sm:$0xff] %v754
    %763 = vst [vmem:[#allocation7 + $0x18] sm:$0xff] %v755
    %764 = vst [vmem:[#allocation7 + $0x20] sm:$0xff] %v756
    %765 = vst [vmem:[#allocation7 + $0x28] sm:$0xff] %v757
    %766 = vst [vmem:[#allocation7 + $0x30] sm:$0xff] %v758
    %767 = vst [vmem:[#allocation7 + $0x38] sm:$0xff] %v759
    %768 = vst.msk [vmem:[%s4] sm:$0xff] %vm561, %v543
    // Predicated region
    $region30: #{tpu_custom_call.1} parent=1 // pred_check
      _
    $region31: #{tpu_custom_call.1} parent=1 // pred_check_branch
      %770 = sbr.rel (0) target = $region33
    $region32: #{tpu_custom_call.1} parent=1 // pred_region
      _
    $region33: #{tpu_custom_call.1} parent=1 // pred_fallthru
      _
    // Predicated region
    $region34: #{tpu_custom_call.1} parent=1 // pred_check
      _
    $region35: #{tpu_custom_call.1} parent=1 // pred_check_branch
      %772 = sbr.rel (0) target = $region37
    $region36: #{tpu_custom_call.1} parent=1 // pred_region
      _
    $region37: #{tpu_custom_call.1} parent=1 // pred_fallthru
      _
    // Predicated region
    $region38: #{tpu_custom_call.1} parent=1 // pred_check
      _
    $region39: #{tpu_custom_call.1} parent=1 // pred_check_branch
      %774 = sbr.rel (0) target = $region41
    $region40: #{tpu_custom_call.1} parent=1 // pred_region
      %s776 = ssub.s32 1024, 1024
      %777 = vsyncadd [#allocation4], %s776
      %s779 = sshll.u32 [#allocation7], 4
      %s780 = int_to_ptr.vmem [resolvable:$true] %s779
      %782 = dma.vmem_to_hbm [thread:$0]  %s780, 1024, %s6, [#allocation4]
    $region41: #{tpu_custom_call.1} parent=1 // pred_fallthru
      _
    // Predicated region
    $region42: #{tpu_custom_call.1} parent=1 // pred_check
      _
    $region43: #{tpu_custom_call.1} parent=1 // pred_check_branch
      %784 = sbr.rel (0) target = $region45
    $region44: #{tpu_custom_call.1} parent=1 // pred_region
      _
    $region45: #{tpu_custom_call.1} parent=1 // pred_fallthru
      _
    // Predicated region
    $region46: #{tpu_custom_call.1} parent=1 // pred_check
      _
    $region47: #{tpu_custom_call.1} parent=1 // pred_check_branch
      %786 = sbr.rel (0) target = $region49
    $region48: #{tpu_custom_call.1} parent=1 // pred_region
      _
    $region49: #{tpu_custom_call.1} parent=1 // pred_fallthru
      _
    // Predicated region
    $region50: #{tpu_custom_call.1} parent=1 // pred_check
      _
    $region51: #{tpu_custom_call.1} parent=1 // pred_check_branch
      %788 = sbr.rel (0) target = $region53
    $region52: #{tpu_custom_call.1} parent=1 // pred_region
      %789 = dma.done [#allocation4], 1024
    $region53: #{tpu_custom_call.1} parent=1 // pred_fallthru
      _
    %790 = vsyncpa [#allocation3], 1
    %791 = vsyncpa [#allocation6], 1
    %792 = vsyncpa [#allocation4], 1

</llo_original>
